<compile_context>
chip_gen: v5e
topology: v5e:2x2
jax: 0.10.0
libtpu: 0.0.40
codegen_flags: <defaults>
</compile_context>

<pallas_src>
import functools

import jax
import jax.numpy as jnp
from jax.experimental import pallas as pl
from jax.experimental.pallas import tpu as pltpu


def _causal_conv1d_kernel(x_ref, w_ref, b_ref, o_ref, halo_ref, *,
                          K, dilation, H, TL, nt, compute_dtype):
    # x_ref   : (1, C_in, TL)        current time tile, original NCL layout
    # w_ref   : (C_out, K*C_in)      weights, taps folded into contraction dim
    # b_ref   : (C_out, 1)           bias (f32)
    # o_ref   : (1, C_out, TL)       output tile, original NCL layout
    # halo_ref: (C_in, max(H,1))     last H input columns of the previous tile
    j = pl.program_id(1)

    if H > 0:
        # First time tile of this batch element: the halo is the causal
        # left-padding (zeros) -> jnp.pad in the wrapper is not needed.
        @pl.when(j == 0)
        def _():
            halo_ref[...] = jnp.zeros_like(halo_ref)

    x_blk = x_ref[0, :, :]                                    # (C_in, TL)
    if H > 0:
        x_win = jnp.concatenate([halo_ref[...], x_blk], axis=-1)  # (C_in, H+TL)
    else:
        x_win = x_blk
    if compute_dtype is not None:
        x_win = x_win.astype(compute_dtype)

    # im2col: fuse the K dilated taps into one MXU matmul (contraction K*C_in).
    slab = jnp.concatenate(
        [x_win[:, k * dilation:k * dilation + TL] for k in range(K)], axis=0
    )                                                         # (K*C_in, TL)
    acc = jnp.dot(w_ref[...], slab,
                  preferred_element_type=jnp.float32)         # (C_out, TL) f32
    o_ref[0, :, :] = (acc + b_ref[...]).astype(o_ref.dtype)

    if nt > 1 and H > 0:
        # Carry the last H input columns as the next tile's causal halo.
        halo_ref[...] = x_blk[:, TL - H:]


def causal_conv1d(x, weight, bias, *, kernel_size, dilation, A=False,
                  time_tile=512, compute_dtype=None):
    """x: (N, C_in, L); weight: (C_out, C_in, K) (PyTorch layout); bias: (C_out,).

    time_tile: preferred time tile (multiple of 128). Use ~256 on v7x (64 MiB
    VMEM per TC) and 512 on v5e/v6e; irrelevant for tiny L.
    compute_dtype: e.g. jnp.bfloat16 to feed the MXU bf16 operands (v6e/v7x);
    accumulation is always f32.
    """
    N, C_in, L = x.shape
    C_out, C_in_w, K_w = weight.shape
    assert C_in_w == C_in and K_w == kernel_size
    K = kernel_size
    H = (K - 1) * dilation + (1 if A else 0)      # causal halo / left-pad length

    # Pick a lane-dense time tile that divides L and covers the halo.
    TL = None
    for cand in (time_tile, 512, 256, 128):
        if cand <= L and L % cand == 0 and cand >= H:
            TL = cand
            break
    if TL is None:
        # TODO(synk): right-pad L to a tile multiple instead of falling back to
        # a single whole-sequence tile (only matters for huge, awkward L).
        TL = L
    nt = L // TL

    # Fold the K taps into the contraction dim: w2[co, k*C_in + ci] = w[co, ci, k].
    w2 = jnp.transpose(weight, (0, 2, 1)).reshape(C_out, K * C_in)
    if compute_dtype is not None:
        w2 = w2.astype(compute_dtype)
    b2 = bias.reshape(C_out, 1).astype(jnp.float32)

    kernel = functools.partial(
        _causal_conv1d_kernel,
        K=K, dilation=dilation, H=H, TL=TL, nt=nt, compute_dtype=compute_dtype)

    out = pl.pallas_call(
        kernel,
        out_shape=jax.ShapeDtypeStruct((N, C_out, L), x.dtype),
        grid_spec=pltpu.PrefetchScalarGridSpec(
            num_scalar_prefetch=0,
            grid=(N, nt),
            in_specs=[
                pl.BlockSpec((1, C_in, TL), lambda n, j: (n, 0, j)),
                pl.BlockSpec((C_out, K * C_in), lambda n, j: (0, 0)),
                pl.BlockSpec((C_out, 1), lambda n, j: (0, 0)),
            ],
            out_specs=pl.BlockSpec((1, C_out, TL), lambda n, j: (n, 0, j)),
            scratch_shapes=[pltpu.VMEM((C_in, max(H, 1)), x.dtype)],
        ),
        compiler_params=pltpu.CompilerParams(
            # N is independent (megacore-shardable); the time axis carries the
            # halo scratch and must stay sequential.
            dimension_semantics=("parallel", "arbitrary"),
            vmem_limit_bytes=32 * 1024 * 1024,
        ),
    )(x, w2, b2)
    # The A-trim of the conv output is implicit: we only ever compute the
    # first L output time steps.
    return out


def _reference(x_ncl, weight_oik, bias_o, *, kernel_size, dilation, A):
    padding = (kernel_size - 1) * dilation + (1 if A else 0)
    x_pad = jnp.pad(x_ncl, ((0, 0), (0, 0), (padding, 0)))
    out = jax.lax.conv_general_dilated(
        x_pad, weight_oik,
        window_strides=(1,), padding='VALID',
        rhs_dilation=(dilation,),
        dimension_numbers=('NCH', 'OIH', 'NCH'))
    out = out + bias_o[None, :, None]
    if A:
        out = out[:, :, :-1]
    return out


if __name__ == "__main__":
    base_key = jax.random.PRNGKey(0)

    def run_case(N, C_in, C_out, L, kernel_size, dilation, A, *,
                 time_tile=512, compute_dtype=None, atol=1e-5, rtol=1e-5):
        key = jax.random.fold_in(base_key, L + 31 * kernel_size + 131 * dilation)
        kx, kw, kb = jax.random.split(key, 3)
        x = jax.random.normal(kx, (N, C_in, L), dtype=jnp.float32)
        weight = 0.1 * jax.random.normal(kw, (C_out, C_in, kernel_size),
                                         dtype=jnp.float32)
        bias = 0.1 * jax.random.normal(kb, (C_out,), dtype=jnp.float32)

        out = causal_conv1d(x, weight, bias, kernel_size=kernel_size,
                            dilation=dilation, A=A, time_tile=time_tile,
                            compute_dtype=compute_dtype)
        out = jax.block_until_ready(out)

        ref = _reference(x, weight, bias, kernel_size=kernel_size,
                         dilation=dilation, A=A)
        assert out.shape == (N, C_out, L), out.shape
        err = float(jnp.max(jnp.abs(out - ref)))
        assert jnp.allclose(out, ref, atol=atol, rtol=rtol), err

    # 1) Small shapes matching the module's toy config (single time tile).
    run_case(2, 4, 8, 16, 3, 2, True)
    # 2) Multi-tile time axis (exercises the in-kernel causal halo carry), f32.
    run_case(2, 4, 8, 256, 3, 4, False, time_tile=128)
    # 3) bf16 operands (v6e/v7x MXU path), f32 accumulation, looser tolerance.
    run_case(2, 4, 8, 256, 3, 4, True, time_tile=128,
             compute_dtype=jnp.bfloat16, atol=3e-2, rtol=3e-2)

    print("KERNEL_OK")
</pallas_src>

<mosaic_0001>
module attributes {stable_mosaic.version = 11 : i64} {
  func.func @_causal_conv1d_kernel(%arg0: i32, %arg1: i32, %arg2: memref<1x4x16xf32, #tpu.memory_space<vmem>>, %arg3: memref<8x12xf32, #tpu.memory_space<vmem>>, %arg4: memref<8x1xf32, #tpu.memory_space<vmem>>, %arg5: memref<1x8x16xf32, #tpu.memory_space<vmem>>, %arg6: memref<4x5xf32, #tpu.memory_space<vmem>>) attributes {dimension_semantics = [#tpu.dimension_semantics<parallel>, #tpu.dimension_semantics<arbitrary>], iteration_bounds = array<i64: 2, 1>, scalar_prefetch = 0 : i64, scratch_operands = 1 : i64, tpu.core_type = #tpu.core_type<tc>, window_params = [{transform_indices = @transform_0, window_bounds = array<i64: 1, 4, 16>}, {pipeline_mode = #tpu.pipeline_mode<synchronous>, transform_indices = @transform_1, window_bounds = array<i64: 8, 12>}, {pipeline_mode = #tpu.pipeline_mode<synchronous>, transform_indices = @transform_2, window_bounds = array<i64: 8, 1>}, {transform_indices = @transform_3, window_bounds = array<i64: 1, 8, 16>}]} {
    %c0_i32 = arith.constant 0 : i32
    %0 = arith.cmpi eq, %arg1, %c0_i32 : i32
    %1 = arith.extui %0 : i1 to i32
    %c0_i32_0 = arith.constant 0 : i32
    %2 = arith.cmpi ne, %1, %c0_i32_0 : i32
    scf.if %2 {
      %cst_12 = arith.constant 0.000000e+00 : f32
      %19 = vector.broadcast %cst_12 : f32 to vector<4x5xf32>
      %c0_13 = arith.constant 0 : index
      %c0_14 = arith.constant 0 : index
      %20 = vector.load %arg6[%c0_13, %c0_14] : memref<4x5xf32, #tpu.memory_space<vmem>>, vector<4x5xf32>
      tpu.vector_store %arg6[%c0_13, %c0_14], %19 {strides = array<i32>} : memref<4x5xf32, #tpu.memory_space<vmem>>, vector<4x5xf32>,
    } else {
    }
    %c0 = arith.constant 0 : index
    %c0_1 = arith.constant 0 : index
    %c0_2 = arith.constant 0 : index
    %3 = vector.load %arg2[%c0, %c0_1, %c0_2] : memref<1x4x16xf32, #tpu.memory_space<vmem>>, vector<1x4x16xf32>
    %4 = vector.shape_cast %3 : vector<1x4x16xf32> to vector<4x16xf32>
    %c0_3 = arith.constant 0 : index
    %c0_4 = arith.constant 0 : index
    %5 = vector.load %arg6[%c0_3, %c0_4] : memref<4x5xf32, #tpu.memory_space<vmem>>, vector<4x5xf32>
    %6 = tpu.concatenate %5, %4 in 1 : vector<4x5xf32>, vector<4x16xf32> -> vector<4x21xf32>
    %7 = vector.extract_strided_slice %6 {offsets = [0, 0], sizes = [4, 16], strides = [1, 1]} : vector<4x21xf32> to vector<4x16xf32>
    %8 = vector.extract_strided_slice %6 {offsets = [0, 2], sizes = [4, 16], strides = [1, 1]} : vector<4x21xf32> to vector<4x16xf32>
    %9 = vector.extract_strided_slice %6 {offsets = [0, 4], sizes = [4, 16], strides = [1, 1]} : vector<4x21xf32> to vector<4x16xf32>
    %10 = tpu.concatenate %7, %8, %9 in 0 : vector<4x16xf32>, vector<4x16xf32>, vector<4x16xf32> -> vector<12x16xf32>
    %c0_5 = arith.constant 0 : index
    %c0_6 = arith.constant 0 : index
    %11 = vector.load %arg3[%c0_5, %c0_6] : memref<8x12xf32, #tpu.memory_space<vmem>>, vector<8x12xf32>
    %cst = arith.constant dense<0.000000e+00> : vector<8x16xf32>
    %12 = tpu.matmul %11, %10, %cst {dimension_numbers = #tpu.dot_dimension_numbers<[1], [0], [0], [1], [0, 0, 1, 1], [], []>} : vector<8x12xf32>, vector<12x16xf32>, vector<8x16xf32> -> vector<8x16xf32>
    %c0_7 = arith.constant 0 : index
    %c0_8 = arith.constant 0 : index
    %13 = vector.load %arg4[%c0_7, %c0_8] : memref<8x1xf32, #tpu.memory_space<vmem>>, vector<8x1xf32>
    %14 = vector.broadcast %13 : vector<8x1xf32> to vector<8x16xf32>
    %15 = arith.addf %12, %14 : vector<8x16xf32>
    %c0_9 = arith.constant 0 : index
    %c0_10 = arith.constant 0 : index
    %c0_11 = arith.constant 0 : index
    %16 = vector.load %arg5[%c0_9, %c0_10, %c0_11] : memref<1x8x16xf32, #tpu.memory_space<vmem>>, vector<1x8x16xf32>
    %17 = vector.shape_cast %16 : vector<1x8x16xf32> to vector<8x16xf32>
    %18 = vector.shape_cast %15 : vector<8x16xf32> to vector<1x8x16xf32>
    tpu.vector_store %arg5[%c0_9, %c0_10, %c0_11], %18 {strides = array<i32>} : memref<1x8x16xf32, #tpu.memory_space<vmem>>, vector<1x8x16xf32>,
    return
  }
  func.func @transform_0(%arg0: i32, %arg1: i32) -> (i32, i32, i32) {
    %c0_i32 = arith.constant 0 : i32
    %c0_i32_0 = arith.constant 0 : i32
    return %arg0, %c0_i32, %arg1 : i32, i32, i32
  }
  func.func @transform_1(%arg0: i32, %arg1: i32) -> (i32, i32) {
    %c0_i32 = arith.constant 0 : i32
    %c0_i32_0 = arith.constant 0 : i32
    %c0_i32_1 = arith.constant 0 : i32
    return %c0_i32, %c0_i32_0 : i32, i32
  }
  func.func @transform_2(%arg0: i32, %arg1: i32) -> (i32, i32) {
    %c0_i32 = arith.constant 0 : i32
    %c0_i32_0 = arith.constant 0 : i32
    %c0_i32_1 = arith.constant 0 : i32
    return %c0_i32, %c0_i32_0 : i32, i32
  }
  func.func @transform_3(%arg0: i32, %arg1: i32) -> (i32, i32, i32) {
    %c0_i32 = arith.constant 0 : i32
    %c0_i32_0 = arith.constant 0 : i32
    return %arg0, %c0_i32, %arg1 : i32, i32, i32
  }
}

</mosaic_0001>

<llo_original>
// kernel: tpu_custom_call.1
$region0: #{tpu_custom_call.1}
  #allocation0 [shape = 'u32[]', space=smem, size = 0x4, offset = 0x4, fixed_abs, tag = 'smem constant byte address 0x4 - core index']
  #allocation1 [shape = 'u32[72,128]{1,0:T(1,128)}', space=vmem, size = 0x9000, scoped, tag = 'internal scratch']
  #allocation2 [shape = 'f32[4,5]{1,0:T(4,128)}', space=vmem, size = 0x800, scoped, tag = 'scratch operand']
  %s0 = inlined_call_operand.vmem [shape: f32[2,4,16], index: 0, kind: input, shape index: {}]
  %s1 = inlined_call_operand.hbm [shape: f32[8,12], index: 1, kind: input, shape index: {}]
  %s2 = inlined_call_operand.vmem [shape: f32[8,1], index: 2, kind: input, shape index: {}]
  %s3 = inlined_call_operand.hbm [shape: f32[2,8,16], index: 3, kind: output, shape index: {}]
  %s4 = sld [smem:[#allocation0]]
  $region53: #{tpu_custom_call.1} parent=0
    _
  %s6 = ssub.s32 1, %s4
  %s7 = scalar_select 0, %s6, %s4
  $region1: #{tpu_custom_call.1} parent=0
    #allocation3 [shape = 'u8[4096]{0}', space=vmem, size = 0x1000, scoped, tag = 'input window, operand 1, single buffered']
    #allocation4 [shape = 's32[2]{0}', space=sflag, size = 0x8, scoped, tag = 'scoped memory for tpu_custom_call.1']
    #allocation5 [shape = 's32[2]{0}', space=sflag, size = 0x8, scoped, tag = 'scoped memory for tpu_custom_call.1']
    #allocation6 [shape = 'u8[8192]{0}', space=vmem, size = 0x2000, scoped, tag = 'output window, operand 0']
    %8 = vsyncpa [#allocation4], 0
    %9 = vsyncpa [#allocation5], 0
    %s10 = scalar_lea.sflag [#allocation5], 1
    %11 = vsyncpa %s10, 0
    loop: start=0, step=1, limit=4
    $region2: #{tpu_custom_call.1} parent=1 // loop_pre_header
      _
    $region3: #{tpu_custom_call.1} parent=1 // loop_header
      %s13 = sphi 0, %s17
      %p14 = scmp.ge.s32.totalorder %s13, 4
      %s20 = sphi 0, %s32
      %s21 = sphi 0, %s28
      %s22 = sphi 0, %s20
      %s23 = sphi 0, %s21
      %s24 = sphi 0, %s22
      %s25 = sphi 0, %s23
      %s37 = sphi 0, %s39
      %s40 = sphi 0, %s37
      %s41 = sphi 0, %s40
      %s57 = sphi 0, %s41
      %s61 = sphi 0, %s61
      %s63 = sphi 0, %s61
      %s64 = sphi 0, %s63
      %s78 = sphi 0, %s64
      %s82 = sphi 0, %s82
      %s84 = sphi 0, %s82
      %s85 = sphi 0, %s84
      %s99 = sphi 0, %s85
      %s107 = sphi 0, %s109
      %s110 = sphi 0, %s107
      %s111 = sphi 0, %s110
      %s127 = sphi 0, %s111
    $region4: #{tpu_custom_call.1} parent=1 // loop_header_branch
      %16 = sbr.rel (%p14) target = $region8
    $region5: #{tpu_custom_call.1} parent=1 // loop_body
      %s18 = ssub.s32 %s13, 1
      %s19 = ssub.s32 %s13, 2
      %s26 = sadd.s32 1, %s21
      %p27 = scmp.ge.s32.totalorder %s26, 1
      %s28 = scalar_select %p27, 0, %s26
      %s29 = sadd.s32 1, %s20
      %s30 = scalar_select %p27, %s29, %s20
      %p31 = scmp.ge.s32.totalorder %s30, 2
      %s32 = scalar_select %p31, 0, %s30
      %s33 = ssub.s32 %s20, %s32
      %s34 = ssub.s32 %s21, %s28
      %s35 = sor.u32 %s33, %s34
      %p36 = scmp.eq.s32.totalorder %s35, 0
      %s38 = sadd.s32 %s37, 1
      %s39 = scalar_select %p36, %s37, %s38
      %p42 = pneg %p36
      %p43 = scmp.eq.s32.totalorder %s13, 1
      %p44 = por %p42, %p43
      %p45 = scmp.ne.s32.totalorder %s37, %s40
      %p46 = scmp.eq.s32.totalorder %s13, 0
      %p47 = por %p45, %p46
      %p48 = scmp.ne.s32.totalorder %s37, %s40
      %p49 = scmp.eq.s32.totalorder %s18, 1
      %p50 = por %p48, %p49
      %p51 = scmp.ne.s32.totalorder %s40, %s41
      %p52 = scmp.eq.s32.totalorder %s18, 0
      %p53 = por %p51, %p52
      %p54 = scmp.ne.s32.totalorder %s40, %s41
      %p55 = scmp.eq.s32.totalorder %s19, 1
      %p56 = por %p54, %p55
      %p58 = scmp.ne.s32.totalorder %s41, %s57
      %p59 = scmp.eq.s32.totalorder %s19, 0
      %p60 = por %p58, %p59
      %s62 = sadd.s32 %s61, 1
      %p65 = scmp.eq.s32.totalorder %s13, 1
      %p66 = scmp.ne.s32.totalorder %s61, %s63
      %p67 = scmp.eq.s32.totalorder %s13, 0
      %p68 = por %p66, %p67
      %p69 = scmp.ne.s32.totalorder %s61, %s63
      %p70 = scmp.eq.s32.totalorder %s18, 1
      %p71 = por %p69, %p70
      %p72 = scmp.ne.s32.totalorder %s63, %s64
      %p73 = scmp.eq.s32.totalorder %s18, 0
      %p74 = por %p72, %p73
      %p75 = scmp.ne.s32.totalorder %s63, %s64
      %p76 = scmp.eq.s32.totalorder %s19, 1
      %p77 = por %p75, %p76
      %p79 = scmp.ne.s32.totalorder %s64, %s78
      %p80 = scmp.eq.s32.totalorder %s19, 0
      %p81 = por %p79, %p80
      %s83 = sadd.s32 %s82, 1
      %p86 = scmp.eq.s32.totalorder %s13, 1
      %p87 = scmp.ne.s32.totalorder %s82, %s84
      %p88 = scmp.eq.s32.totalorder %s13, 0
      %p89 = por %p87, %p88
      %p90 = scmp.ne.s32.totalorder %s82, %s84
      %p91 = scmp.eq.s32.totalorder %s18, 1
      %p92 = por %p90, %p91
      %p93 = scmp.ne.s32.totalorder %s84, %s85
      %p94 = scmp.eq.s32.totalorder %s18, 0
      %p95 = por %p93, %p94
      %p96 = scmp.ne.s32.totalorder %s84, %s85
      %p97 = scmp.eq.s32.totalorder %s19, 1
      %p98 = por %p96, %p97
      %p100 = scmp.ne.s32.totalorder %s85, %s99
      %p101 = scmp.eq.s32.totalorder %s19, 0
      %p102 = por %p100, %p101
      %s103 = ssub.s32 %s20, %s32
      %s104 = ssub.s32 %s21, %s28
      %s105 = sor.u32 %s103, %s104
      %p106 = scmp.eq.s32.totalorder %s105, 0
      %s108 = sadd.s32 %s107, 1
      %s109 = scalar_select %p106, %s107, %s108
      %p112 = pneg %p106
      %p113 = scmp.eq.s32.totalorder %s13, 1
      %p114 = por %p112, %p113
      %p115 = scmp.ne.s32.totalorder %s107, %s110
      %p116 = scmp.eq.s32.totalorder %s13, 0
      %p117 = por %p115, %p116
      %p118 = scmp.ne.s32.totalorder %s107, %s110
      %p119 = scmp.eq.s32.totalorder %s18, 1
      %p120 = por %p118, %p119
      %p121 = scmp.ne.s32.totalorder %s110, %s111
      %p122 = scmp.eq.s32.totalorder %s18, 0
      %p123 = por %p121, %p122
      %p124 = scmp.ne.s32.totalorder %s110, %s111
      %p125 = scmp.eq.s32.totalorder %s19, 1
      %p126 = por %p124, %p125
      %p128 = scmp.ne.s32.totalorder %s111, %s127
      %p129 = scmp.eq.s32.totalorder %s19, 0
      %p130 = por %p128, %p129
      %p131 = scmp.le.s32.totalorder 1, %s13
      %p132 = scmp.lt.s32.totalorder %s13, 3
      %p133 = pnand %p131, %p132
      %p134 = pneg %p133
      // Predicated region
      $region9: #{tpu_custom_call.1} parent=5 // pred_check
        _
      $region10: #{tpu_custom_call.1} parent=5 // pred_check_branch
        %136 = sbr.rel (%p133) target = $region12
      $region11: #{tpu_custom_call.1} parent=5 // pred_region
        %s137 = ssub.s32 %s13, 1
        // Predicated region
        $region13: #{tpu_custom_call.1} parent=11 // pred_check
          %p138 = pneg %p74
        $region14: #{tpu_custom_call.1} parent=11 // pred_check_branch
          %140 = sbr.rel (%p138) target = $region16
        $region15: #{tpu_custom_call.1} parent=11 // pred_region
          %142 = vsyncadd [#allocation4], 0
          %s144 = sshll.u32 %s1, 4
          %s145 = int_to_ptr.hbm [resolvable:$true] %s144
          %s146 = sshll.u32 [#allocation3], 4
          %s147 = int_to_ptr.vmem [resolvable:$true] %s146
          %149 = dma.hbm_to_vmem [thread:$0]  %s145, 128, %s147, [#allocation4]
        $region16: #{tpu_custom_call.1} parent=11 // pred_fallthru
          _
        // Predicated region
        $region17: #{tpu_custom_call.1} parent=11 // pred_check
          %p150 = pneg %p95
        $region18: #{tpu_custom_call.1} parent=11 // pred_check_branch
          %152 = sbr.rel (%p150) target = $region20
        $region19: #{tpu_custom_call.1} parent=11 // pred_region
          _
        $region20: #{tpu_custom_call.1} parent=11 // pred_fallthru
          _
      $region12: #{tpu_custom_call.1} parent=5 // pred_fallthru
        _
      %p153 = scmp.lt.s32.totalorder %s13, 2
      // Predicated region
      $region21: #{tpu_custom_call.1} parent=5 // pred_check
        %p154 = pneg %p153
      $region22: #{tpu_custom_call.1} parent=5 // pred_check_branch
        %156 = sbr.rel (%p154) target = $region24
      $region23: #{tpu_custom_call.1} parent=5 // pred_region
        // Predicated region
        $region25: #{tpu_custom_call.1} parent=23 // pred_check
          %p157 = pneg %p47
        $region26: #{tpu_custom_call.1} parent=23 // pred_check_branch
          %159 = sbr.rel (%p157) target = $region28
        $region27: #{tpu_custom_call.1} parent=23 // pred_region
          %p160 = scmp.lt.s32.totalorder %s20, 1
          %s161 = scalar_select %p160, %s20, 1
          %p162 = scmp.lt.s32.totalorder %s21, 0
          %s163 = scalar_select %p162, %s21, 0
          %s164 = sadd.s32 %s163, %s161
          %s165 = smul.addr %s164, 4
          %s166 = scalar_lea.vmem %s0, %s165
        $region28: #{tpu_custom_call.1} parent=23 // pred_fallthru
          _
      $region24: #{tpu_custom_call.1} parent=5 // pred_fallthru
        _
      %p167 = scmp.le.s32.totalorder 1, %s13
      %p168 = scmp.lt.s32.totalorder %s13, 3
      %p169 = pnand %p167, %p168
      %p170 = pneg %p169
      // Predicated region
      $region29: #{tpu_custom_call.1} parent=5 // pred_check
        _
      $region30: #{tpu_custom_call.1} parent=5 // pred_check_branch
        %172 = sbr.rel (%p169) target = $region32
      $region31: #{tpu_custom_call.1} parent=5 // pred_region
        %s173 = ssub.s32 %s13, 1
        // Predicated region
        $region33: #{tpu_custom_call.1} parent=31 // pred_check
          %p174 = pneg %p74
        $region34: #{tpu_custom_call.1} parent=31 // pred_check_branch
          %176 = sbr.rel (%p174) target = $region36
        $region35: #{tpu_custom_call.1} parent=31 // pred_region
          %178 = dma.done [#allocation4], 128
        $region36: #{tpu_custom_call.1} parent=31 // pred_fallthru
          _
        %p179 = scmp.lt.s32.totalorder %s22, 1
        %s180 = scalar_select %p179, %s22, 1
        %p181 = scmp.lt.s32.totalorder %s23, 0
        %s182 = scalar_select %p181, %s23, 0
        %s183 = sadd.s32 %s182, %s180
        %s184 = smul.addr %s183, 4
        %s185 = scalar_lea.vmem %s0, %s184
        %p186 = pneg %p53
        %p187 = pneg %p50
        %p188 = pneg %p74
        %p189 = pneg %p71
        %p190 = pneg %p95
        %p191 = pneg %p92
        %p192 = pneg %p123
        %p193 = pneg %p120
        %s194 = sand.u32 %s110, 1
        %s195 = scalar_lea.sflag [#allocation5], %s194
        %s196 = sand.u32 %s110, 1
        %s197 = smul.addr %s196, 8
        %s198 = scalar_lea.vmem [#allocation6], %s197
        %p199 = scmp.lt.s32.totalorder %s22, 1
        %s200 = scalar_select %p199, %s22, 1
        %p201 = scmp.lt.s32.totalorder %s23, 0
        %s202 = scalar_select %p201, %s23, 0
        %s203 = sadd.s32 %s202, %s200
        %s204 = smul.addr %s203, 4
        %s205 = scalar_lea.vmem %s0, %s204
        %p206 = scmp.eq.s32.totalorder %s23, 0
        // Predicated region
        $region37: #{tpu_custom_call.1} parent=31 // pred_check
          %p207 = pneg %p206
        $region38: #{tpu_custom_call.1} parent=31 // pred_check_branch
          %209 = sbr.rel (%p207) target = $region40
        $region39: #{tpu_custom_call.1} parent=31 // pred_region
          %vm210 = vcmask 35840
          %211 = vst.msk [vmem:[#allocation2] sm:$0xf] %vm210, 0.0
        $region40: #{tpu_custom_call.1} parent=31 // pred_fallthru
          _
        %v212 = vld [vmem:[%s205] sm:$0xf]
        %v213 = vld [vmem:[#allocation2] sm:$0xf]
        %215 = vrot.lane.b32.xlu0 %v212, 5
        %v216 = vpop.permute.xlu0 %215
        %vm218 = vcmask 39936
        %v219 = vsel %vm218, %v213, %v216
        %v221 = vrot.slane %v219, 4
        %222 = vrot.lane.b32.xlu0 %v221, 126
        %v223 = vpop.permute.xlu0 %222
        %225 = vrot.lane.b32.xlu0 %v219, 124
        %v226 = vpop.permute.xlu0 %225
        %vm227 = vcmask 1043456
        %v228 = vsel %vm227, %v219, %v223
        %v229 = vld [vmem:[#allocation3] sm:$0xff]
        %v230 = vld [vmem:[%s2] sm:$0xff]
        %232 = vset.pattern.permute.xlu0 0
        %233 = vperm.xlu0 %232, %v230
        %v234 = vpop.permute.xlu0 %233
        %vm236 = vcmask 97280
        %v238 = vsel %vm236, %v229, 0
        %v240 = vsel %vm227, %v226, 0
        %242 = vmatpush.msra.mxu0 0.0
        %243 = vmatpush.msra.mxu0 0.0
        %244 = vmatpush.msra.mxu0 0.0
        %245 = vmatpush.msra.mxu0 0.0
        %246 = vmatpush.msra.mxu0 0.0
        %247 = vmatpush.msra.mxu0 0.0
        %248 = vmatpush.msra.mxu0 0.0
        %249 = vmatpush.msra.mxu0 0.0
        %250 = vmatpush.msra.mxu0 0.0
        %251 = vmatpush.msra.mxu0 0.0
        %252 = vmatpush.msra.mxu0 0.0
        %253 = vmatpush.msra.mxu0 0.0
        %254 = vmatpush.msra.mxu0 0.0
        %255 = vmatpush.msra.mxu0 0.0
        %256 = vmatpush.msra.mxu0 %v240
        %257 = vmatpush.msra.mxu0 %v228
        %258 = vmatmul.f32.gmra.mxu0 %v238
        %v259 = vpop.f32.mrf.mxu0
        %v260 = vadd.f32 %v234, %v259
        %261 = vdwg.mxu0
        %vm262 = vcmask 130048
        %263 = vst.msk [vmem:[%s198] sm:$0xff] %vm262, %v260
        %s264 = sand.u32 %s110, 1
        %s265 = scalar_lea.sflag [#allocation5], %s264
        %s266 = sand.u32 %s110, 1
        %s267 = smul.addr %s266, 8
        %s268 = scalar_lea.vmem [#allocation6], %s267
        // Predicated region
        $region41: #{tpu_custom_call.1} parent=31 // pred_check
          %p269 = pneg %p120
        $region42: #{tpu_custom_call.1} parent=31 // pred_check_branch
          %271 = sbr.rel (%p269) target = $region44
        $region43: #{tpu_custom_call.1} parent=31 // pred_region
          %273 = vsyncadd %s265, 0
          %s274 = sadd.s32 %s23, %s22
          %s275 = smul.addr %s274, 8
          %s276 = scalar_lea.hbm %s3, %s275
          %s278 = sshll.u32 %s268, 4
          %s279 = int_to_ptr.vmem [resolvable:$true] %s278
          %s280 = sshll.u32 %s276, 4
          %s281 = int_to_ptr.hbm [resolvable:$true] %s280
          %283 = dma.vmem_to_hbm [thread:$0]  %s279, 128, %s281, %s265
        $region44: #{tpu_custom_call.1} parent=31 // pred_fallthru
          _
      $region32: #{tpu_custom_call.1} parent=5 // pred_fallthru
        _
      %p284 = scmp.le.s32.totalorder 2, %s13
      // Predicated region
      $region45: #{tpu_custom_call.1} parent=5 // pred_check
        %p285 = pneg %p284
      $region46: #{tpu_custom_call.1} parent=5 // pred_check_branch
        %287 = sbr.rel (%p285) target = $region48
      $region47: #{tpu_custom_call.1} parent=5 // pred_region
        %s288 = ssub.s32 %s13, 2
        // Predicated region
        $region49: #{tpu_custom_call.1} parent=47 // pred_check
          %p289 = pneg %p126
        $region50: #{tpu_custom_call.1} parent=47 // pred_check_branch
          %291 = sbr.rel (%p289) target = $region52
        $region51: #{tpu_custom_call.1} parent=47 // pred_region
          %s292 = sand.u32 %s111, 1
          %s293 = scalar_lea.sflag [#allocation5], %s292
          %s294 = sand.u32 %s111, 1
          %s295 = smul.addr %s294, 8
          %s296 = scalar_lea.vmem [#allocation6], %s295
          %298 = dma.done %s293, 128
        $region52: #{tpu_custom_call.1} parent=47 // pred_fallthru
          _
      $region48: #{tpu_custom_call.1} parent=5 // pred_fallthru
        _
    $region6: #{tpu_custom_call.1} parent=1 // loop_footer
      %s17 = sadd.s32 1, %s13
    $region7: #{tpu_custom_call.1} parent=1 // loop_footer_branch
      %12 = sbr.rel target = $region3
    $region8: #{tpu_custom_call.1} parent=1 // loop_exit
      _
    %299 = vsyncpa [#allocation4], 1
    %s300 = scalar_lea.sflag [#allocation4], 1
    %301 = vsyncpa %s300, 1
    %302 = vsyncpa [#allocation5], 1
    %s303 = scalar_lea.sflag [#allocation5], 1
    %304 = vsyncpa %s303, 1

</llo_original>
